<compile_context>
chip_gen: v7x
topology: tpu7x:2x2x1
jax: 0.10.0
libtpu: 0.0.40
codegen_flags: <defaults>
</compile_context>

<pallas_src>
import jax
import jax.numpy as jnp
from jax.experimental import pallas as pl
from jax.experimental.pallas import tpu as pltpu


def _round_up(x, m):
    return ((x + m - 1) // m) * m


def _linear_add_relu_kernel(x_ref, w_ref, b_ref, o_ref):
    # x_ref: (tm, tk) bf16
    # w_ref: (tk, tn) bf16   (weight pre-transposed on host: no in-kernel vxpose)
    # b_ref: (1, tn)  f32    (bias with `other` already folded in)
    # o_ref: (tm, tn) f32    -- doubles as the K-reduction accumulator
    k = pl.program_id(2)

    @pl.when(k == 0)
    def _():
        o_ref[...] = jnp.zeros_like(o_ref)

    o_ref[...] += jnp.dot(x_ref[...], w_ref[...],
                          preferred_element_type=jnp.float32)

    @pl.when(k == pl.num_programs(2) - 1)
    def _():
        # Single fused epilogue store (f32 math: v5e VPU has no bf16).
        o_ref[...] = jnp.maximum(o_ref[...] + b_ref[...], 0.0)


def linear_add_relu(x, weight, bias, other=1.0, *, tm=512, tn=512, tk=1024):
    """relu(x @ weight.T + bias + other), linear applied on the last axis.

    x:      (..., F_in)   float
    weight: (F_out, F_in) float  (PyTorch nn.Linear layout: [out, in])
    bias:   (F_out,)      float
    other:  python/JAX scalar
    """
    orig_shape = x.shape
    f_in = orig_shape[-1]
    f_out = weight.shape[0]
    m = 1
    for d in orig_shape[:-1]:
        m *= d

    # Lane-dense padding: features -> multiple of 128 (unmasked vst, full MXU
    # lanes), rows -> multiple of 8 (sublane).  Zero K-padding is exact (zero
    # columns contribute 0); padded M rows / N cols are sliced off at the end.
    mp = _round_up(m, 8)
    kp = _round_up(f_in, 128)
    np_ = _round_up(f_out, 128)

    # Clamp tiles to the (padded) problem, then make sure the parallel grid
    # has >= 2 blocks where possible so v7x's two TensorCores both get work.
    tm = min(tm, mp)
    tn = min(tn, np_)
    tk = min(tk, kp)
    if (mp // tm) < 2 and (np_ // tn) < 2 and mp > 8:
        tm = max(8, _round_up(mp // 2, 8))
    mp = _round_up(mp, tm)
    np_ = _round_up(np_, tn)
    kp = _round_up(kp, tk)

    # bf16 MXU operands with f32 accumulation (results match f32 reference to
    # ~1e-2; documented, not bit-exact).
    # TODO(synk): in a real model, pad/cast/transpose the weight & bias once at
    # init instead of per call, and stream f32 x with an in-kernel bf16 cast.
    x2d = jnp.pad(x.reshape(m, f_in).astype(jnp.bfloat16),
                  ((0, mp - m), (0, kp - f_in)))
    w2d = jnp.pad(weight.astype(jnp.bfloat16).T,          # (K, N) layout
                  ((0, kp - f_in), (0, np_ - f_out)))
    b2d = jnp.pad((bias.astype(jnp.float32)
                   + jnp.float32(other)).reshape(1, f_out),
                  ((0, 0), (0, np_ - f_out)))

    grid = (mp // tm, np_ // tn, kp // tk)

    # Truthful traffic estimate: X is re-streamed per N-block, W per M-block.
    cost = pl.CostEstimate(
        flops=2 * mp * np_ * kp,
        transcendentals=0,
        bytes_accessed=(x2d.size * 2 * (np_ // tn)
                        + w2d.size * 2 * (mp // tm)
                        + b2d.size * 4
                        + mp * np_ * 4),
    )

    # Explicit scoped-VMEM budget (v5e default is 16 MiB; v7x physical is 64).
    tile_bytes = 2 * (tm * tk * 2 + tk * tn * 2 + tm * tn * 4) + 2 * tn * 4
    vmem_limit = int(min(56 * 1024 * 1024,
                         max(32 * 1024 * 1024, 2 * tile_bytes)))

    out2d = pl.pallas_call(
        _linear_add_relu_kernel,
        out_shape=jax.ShapeDtypeStruct((mp, np_), jnp.float32),
        grid_spec=pltpu.PrefetchScalarGridSpec(
            num_scalar_prefetch=0,
            grid=grid,
            in_specs=[
                pl.BlockSpec((tm, tk), lambda i, j, k: (i, k)),   # x tile
                pl.BlockSpec((tk, tn), lambda i, j, k: (k, j)),   # W.T tile
                pl.BlockSpec((1, tn), lambda i, j, k: (0, j)),    # bias(+other)
            ],
            out_specs=pl.BlockSpec((tm, tn), lambda i, j, k: (i, j)),
        ),
        compiler_params=pltpu.CompilerParams(
            dimension_semantics=("parallel", "parallel", "arbitrary"),
            vmem_limit_bytes=vmem_limit),
        cost_estimate=cost,
    )(x2d, w2d, b2d)

    return out2d[:m, :f_out].reshape(*orig_shape[:-1], f_out)


if __name__ == "__main__":
    # Mirror the PyTorch module semantics: Linear(in_out, in_out) on the last
    # axis of a 4-D input, then +1, then relu.  Small deterministic shapes.
    in_out = 32
    batch, c, h = 2, 4, 8            # x: (2, 4, 8, 32)

    key = jax.random.PRNGKey(0)
    kx, kw, kb = jax.random.split(key, 3)

    x = jax.random.normal(kx, (batch, c, h, in_out), dtype=jnp.float32)
    bound = 1.0 / (in_out ** 0.5)    # PyTorch default Linear init range
    weight = jax.random.uniform(kw, (in_out, in_out), jnp.float32, -bound, bound)
    bias = jax.random.uniform(kb, (in_out,), jnp.float32, -bound, bound)

    out = linear_add_relu(x, weight, bias, other=1.0)
    out = jax.block_until_ready(out)

    # Reference check in plain JAX (f32); tolerance covers the bf16 MXU inputs.
    ref = jnp.maximum(jnp.einsum("bchf,of->bcho", x, weight) + bias + 1.0, 0.0)
    assert out.shape == x.shape
    assert jnp.allclose(out, ref, atol=2e-2, rtol=2e-2), float(
        jnp.max(jnp.abs(out - ref)))

    print("KERNEL_OK")
</pallas_src>

<mosaic_0001>
module attributes {stable_mosaic.version = 11 : i64} {
  func.func @_linear_add_relu_kernel(%arg0: i32, %arg1: i32, %arg2: i32, %arg3: memref<32x128xbf16, #tpu.memory_space<vmem>>, %arg4: memref<128x128xbf16, #tpu.memory_space<vmem>>, %arg5: memref<1x128xf32, #tpu.memory_space<vmem>>, %arg6: memref<32x128xf32, #tpu.memory_space<vmem>>) attributes {dimension_semantics = [#tpu.dimension_semantics<parallel>, #tpu.dimension_semantics<parallel>, #tpu.dimension_semantics<arbitrary>], iteration_bounds = array<i64: 2, 1, 1>, scalar_prefetch = 0 : i64, scratch_operands = 0 : i64, tpu.core_type = #tpu.core_type<tc>, window_params = [{transform_indices = @transform_0, window_bounds = array<i64: 32, 128>}, {transform_indices = @transform_1, window_bounds = array<i64: 128, 128>}, {transform_indices = @transform_2, window_bounds = array<i64: 1, 128>}, {transform_indices = @transform_3, window_bounds = array<i64: 32, 128>}]} {
    %c0_i32 = arith.constant 0 : i32
    %0 = arith.cmpi eq, %arg2, %c0_i32 : i32
    %1 = arith.extui %0 : i1 to i32
    %c0_i32_0 = arith.constant 0 : i32
    %2 = arith.cmpi ne, %1, %c0_i32_0 : i32
    scf.if %2 {
      %cst_10 = arith.constant 0.000000e+00 : f32
      %12 = vector.broadcast %cst_10 : f32 to vector<32x128xf32>
      %c0_11 = arith.constant 0 : index
      %c0_12 = arith.constant 0 : index
      %13 = vector.load %arg6[%c0_11, %c0_12] : memref<32x128xf32, #tpu.memory_space<vmem>>, vector<32x128xf32>
      tpu.vector_store %arg6[%c0_11, %c0_12], %12 {strides = array<i32>} : memref<32x128xf32, #tpu.memory_space<vmem>>, vector<32x128xf32>,
    } else {
    }
    %c0 = arith.constant 0 : index
    %c0_1 = arith.constant 0 : index
    %3 = vector.load %arg6[%c0, %c0_1] : memref<32x128xf32, #tpu.memory_space<vmem>>, vector<32x128xf32>
    %c0_2 = arith.constant 0 : index
    %c0_3 = arith.constant 0 : index
    %4 = vector.load %arg3[%c0_2, %c0_3] : memref<32x128xbf16, #tpu.memory_space<vmem>>, vector<32x128xbf16>
    %c0_4 = arith.constant 0 : index
    %c0_5 = arith.constant 0 : index
    %5 = vector.load %arg4[%c0_4, %c0_5] : memref<128x128xbf16, #tpu.memory_space<vmem>>, vector<128x128xbf16>
    %cst = arith.constant dense<0.000000e+00> : vector<32x128xf32>
    %6 = tpu.matmul %4, %5, %cst {dimension_numbers = #tpu.dot_dimension_numbers<[1], [0], [0], [1], [0, 0, 1, 1], [], []>} : vector<32x128xbf16>, vector<128x128xbf16>, vector<32x128xf32> -> vector<32x128xf32>
    %7 = arith.addf %3, %6 : vector<32x128xf32>
    %c0_6 = arith.constant 0 : index
    %c0_7 = arith.constant 0 : index
    %8 = vector.load %arg6[%c0_6, %c0_7] : memref<32x128xf32, #tpu.memory_space<vmem>>, vector<32x128xf32>
    tpu.vector_store %arg6[%c0_6, %c0_7], %7 {strides = array<i32>} : memref<32x128xf32, #tpu.memory_space<vmem>>, vector<32x128xf32>,
    %c0_i32_8 = arith.constant 0 : i32
    %9 = arith.cmpi eq, %arg2, %c0_i32_8 : i32
    %10 = arith.extui %9 : i1 to i32
    %c0_i32_9 = arith.constant 0 : i32
    %11 = arith.cmpi ne, %10, %c0_i32_9 : i32
    scf.if %11 {
      %c0_10 = arith.constant 0 : index
      %c0_11 = arith.constant 0 : index
      %12 = vector.load %arg6[%c0_10, %c0_11] : memref<32x128xf32, #tpu.memory_space<vmem>>, vector<32x128xf32>
      %c0_12 = arith.constant 0 : index
      %c0_13 = arith.constant 0 : index
      %13 = vector.load %arg5[%c0_12, %c0_13] : memref<1x128xf32, #tpu.memory_space<vmem>>, vector<1x128xf32>
      %14 = vector.broadcast %13 : vector<1x128xf32> to vector<32x128xf32>
      %15 = arith.addf %12, %14 : vector<32x128xf32>
      %cst_14 = arith.constant 0.000000e+00 : f32
      %16 = vector.broadcast %cst_14 : f32 to vector<32x128xf32>
      %17 = arith.maximumf %15, %16 : vector<32x128xf32>
      %c0_15 = arith.constant 0 : index
      %c0_16 = arith.constant 0 : index
      %18 = vector.load %arg6[%c0_15, %c0_16] : memref<32x128xf32, #tpu.memory_space<vmem>>, vector<32x128xf32>
      tpu.vector_store %arg6[%c0_15, %c0_16], %17 {strides = array<i32>} : memref<32x128xf32, #tpu.memory_space<vmem>>, vector<32x128xf32>,
    } else {
    }
    return
  }
  func.func @transform_0(%arg0: i32, %arg1: i32, %arg2: i32) -> (i32, i32) {
    %c0_i32 = arith.constant 0 : i32
    return %arg0, %arg2 : i32, i32
  }
  func.func @transform_1(%arg0: i32, %arg1: i32, %arg2: i32) -> (i32, i32) {
    %c0_i32 = arith.constant 0 : i32
    return %arg2, %arg1 : i32, i32
  }
  func.func @transform_2(%arg0: i32, %arg1: i32, %arg2: i32) -> (i32, i32) {
    %c0_i32 = arith.constant 0 : i32
    %c0_i32_0 = arith.constant 0 : i32
    return %c0_i32, %arg1 : i32, i32
  }
  func.func @transform_3(%arg0: i32, %arg1: i32, %arg2: i32) -> (i32, i32) {
    %c0_i32 = arith.constant 0 : i32
    return %arg0, %arg1 : i32, i32
  }
}

</mosaic_0001>

<llo_original>
// kernel: tpu_custom_call.1
$region0: #{tpu_custom_call.1}
  #allocation0 [shape = 'u32[]', space=smem, size = 0x4, offset = 0x4, fixed_abs, tag = 'smem constant byte address 0x4 - core index']
  #allocation1 [shape = 'u32[144,128]{1,0:T(1,128)}', space=vmem, size = 0x12000, scoped, tag = 'internal scratch']
  %s0 = inlined_call_operand.hbm [shape: bf16[64,128], index: 0, kind: input, shape index: {}]
  %s1 = inlined_call_operand.hbm [shape: bf16[128,128], index: 1, kind: input, shape index: {}]
  %s2 = inlined_call_operand.vmem [shape: f32[1,128], index: 2, kind: input, shape index: {}]
  %s3 = inlined_call_operand.hbm [shape: f32[64,128], index: 3, kind: output, shape index: {}]
  %s4 = sld [smem:[#allocation0]]
  $region61: #{tpu_custom_call.1} parent=0
    _
  %s6 = ssub.s32 1, %s4
  %s7 = scalar_select 0, %s6, %s4
  $region1: #{tpu_custom_call.1} parent=0
    #allocation2 [shape = 'u8[16384]{0}', space=vmem, size = 0x4000, scoped, tag = 'input window, operand 0']
    #allocation3 [shape = 's32[2]{0}', space=sflag, size = 0x8, scoped, tag = 'scoped memory for tpu_custom_call.1']
    #allocation4 [shape = 's32[2]{0}', space=sflag, size = 0x8, scoped, tag = 'scoped memory for tpu_custom_call.1']
    #allocation5 [shape = 'u8[32768]{0}', space=vmem, size = 0x8000, scoped, tag = 'input window, operand 1, single buffered']
    #allocation6 [shape = 's32[1]{0}', space=sflag, size = 0x4, scoped, tag = 'scoped memory for tpu_custom_call.1']
    #allocation7 [shape = 'u8[32768]{0}', space=vmem, size = 0x8000, scoped, tag = 'output window, operand 0']
    %8 = vsyncpa [#allocation3], 0
    %s9 = scalar_lea.sflag [#allocation3], 1
    %10 = vsyncpa %s9, 0
    %11 = vsyncpa [#allocation6], 0
    %12 = vsyncpa [#allocation4], 0
    %s13 = scalar_lea.sflag [#allocation4], 1
    %14 = vsyncpa %s13, 0
    loop: start=0, step=1, limit=4
    $region2: #{tpu_custom_call.1} parent=1 // loop_pre_header
      _
    $region3: #{tpu_custom_call.1} parent=1 // loop_header
      %s16 = sphi 0, %s20
      %p17 = scmp.ge.s32.totalorder %s16, 4
      %s23 = sphi 0, %s42
      %s24 = sphi 0, %s38
      %s25 = sphi 0, %s34
      %s26 = sphi 0, %s23
      %s27 = sphi 0, %s24
      %s28 = sphi 0, %s25
      %s29 = sphi 0, %s26
      %s30 = sphi 0, %s27
      %s31 = sphi 0, %s28
      %s47 = sphi 0, %s49
      %s50 = sphi 0, %s47
      %s51 = sphi 0, %s50
      %s67 = sphi 0, %s51
      %s75 = sphi 0, %s77
      %s78 = sphi 0, %s75
      %s79 = sphi 0, %s78
      %s95 = sphi 0, %s79
      %s101 = sphi 0, %s103
      %s104 = sphi 0, %s101
      %s105 = sphi 0, %s104
      %s121 = sphi 0, %s105
      %s129 = sphi 0, %s131
      %s132 = sphi 0, %s129
      %s133 = sphi 0, %s132
      %s149 = sphi 0, %s133
    $region4: #{tpu_custom_call.1} parent=1 // loop_header_branch
      %19 = sbr.rel (%p17) target = $region8
    $region5: #{tpu_custom_call.1} parent=1 // loop_body
      %s21 = ssub.s32 %s16, 1
      %s22 = ssub.s32 %s16, 2
      %s32 = sadd.s32 1, %s25
      %p33 = scmp.ge.s32.totalorder %s32, 1
      %s34 = scalar_select %p33, 0, %s32
      %s35 = sadd.s32 1, %s24
      %s36 = scalar_select %p33, %s35, %s24
      %p37 = scmp.ge.s32.totalorder %s36, 1
      %s38 = scalar_select %p37, 0, %s36
      %s39 = sadd.s32 1, %s23
      %s40 = scalar_select %p37, %s39, %s23
      %p41 = scmp.ge.s32.totalorder %s40, 2
      %s42 = scalar_select %p41, 0, %s40
      %s43 = ssub.s32 %s23, %s42
      %s44 = ssub.s32 %s25, %s34
      %s45 = sor.u32 %s43, %s44
      %p46 = scmp.eq.s32.totalorder %s45, 0
      %s48 = sadd.s32 %s47, 1
      %s49 = scalar_select %p46, %s47, %s48
      %p52 = pneg %p46
      %p53 = scmp.eq.s32.totalorder %s16, 1
      %p54 = por %p52, %p53
      %p55 = scmp.ne.s32.totalorder %s47, %s50
      %p56 = scmp.eq.s32.totalorder %s16, 0
      %p57 = por %p55, %p56
      %p58 = scmp.ne.s32.totalorder %s47, %s50
      %p59 = scmp.eq.s32.totalorder %s21, 1
      %p60 = por %p58, %p59
      %p61 = scmp.ne.s32.totalorder %s50, %s51
      %p62 = scmp.eq.s32.totalorder %s21, 0
      %p63 = por %p61, %p62
      %p64 = scmp.ne.s32.totalorder %s50, %s51
      %p65 = scmp.eq.s32.totalorder %s22, 1
      %p66 = por %p64, %p65
      %p68 = scmp.ne.s32.totalorder %s51, %s67
      %p69 = scmp.eq.s32.totalorder %s22, 0
      %p70 = por %p68, %p69
      %s71 = ssub.s32 %s25, %s34
      %s72 = ssub.s32 %s24, %s38
      %s73 = sor.u32 %s71, %s72
      %p74 = scmp.eq.s32.totalorder %s73, 0
      %s76 = sadd.s32 %s75, 1
      %s77 = scalar_select %p74, %s75, %s76
      %p80 = pneg %p74
      %p81 = scmp.eq.s32.totalorder %s16, 1
      %p82 = por %p80, %p81
      %p83 = scmp.ne.s32.totalorder %s75, %s78
      %p84 = scmp.eq.s32.totalorder %s16, 0
      %p85 = por %p83, %p84
      %p86 = scmp.ne.s32.totalorder %s75, %s78
      %p87 = scmp.eq.s32.totalorder %s21, 1
      %p88 = por %p86, %p87
      %p89 = scmp.ne.s32.totalorder %s78, %s79
      %p90 = scmp.eq.s32.totalorder %s21, 0
      %p91 = por %p89, %p90
      %p92 = scmp.ne.s32.totalorder %s78, %s79
      %p93 = scmp.eq.s32.totalorder %s22, 1
      %p94 = por %p92, %p93
      %p96 = scmp.ne.s32.totalorder %s79, %s95
      %p97 = scmp.eq.s32.totalorder %s22, 0
      %p98 = por %p96, %p97
      %s99 = ssub.s32 %s24, %s38
      %p100 = scmp.eq.s32.totalorder %s99, 0
      %s102 = sadd.s32 %s101, 1
      %s103 = scalar_select %p100, %s101, %s102
      %p106 = pneg %p100
      %p107 = scmp.eq.s32.totalorder %s16, 1
      %p108 = por %p106, %p107
      %p109 = scmp.ne.s32.totalorder %s101, %s104
      %p110 = scmp.eq.s32.totalorder %s16, 0
      %p111 = por %p109, %p110
      %p112 = scmp.ne.s32.totalorder %s101, %s104
      %p113 = scmp.eq.s32.totalorder %s21, 1
      %p114 = por %p112, %p113
      %p115 = scmp.ne.s32.totalorder %s104, %s105
      %p116 = scmp.eq.s32.totalorder %s21, 0
      %p117 = por %p115, %p116
      %p118 = scmp.ne.s32.totalorder %s104, %s105
      %p119 = scmp.eq.s32.totalorder %s22, 1
      %p120 = por %p118, %p119
      %p122 = scmp.ne.s32.totalorder %s105, %s121
      %p123 = scmp.eq.s32.totalorder %s22, 0
      %p124 = por %p122, %p123
      %s125 = ssub.s32 %s23, %s42
      %s126 = ssub.s32 %s24, %s38
      %s127 = sor.u32 %s125, %s126
      %p128 = scmp.eq.s32.totalorder %s127, 0
      %s130 = sadd.s32 %s129, 1
      %s131 = scalar_select %p128, %s129, %s130
      %p134 = pneg %p128
      %p135 = scmp.eq.s32.totalorder %s16, 1
      %p136 = por %p134, %p135
      %p137 = scmp.ne.s32.totalorder %s129, %s132
      %p138 = scmp.eq.s32.totalorder %s16, 0
      %p139 = por %p137, %p138
      %p140 = scmp.ne.s32.totalorder %s129, %s132
      %p141 = scmp.eq.s32.totalorder %s21, 1
      %p142 = por %p140, %p141
      %p143 = scmp.ne.s32.totalorder %s132, %s133
      %p144 = scmp.eq.s32.totalorder %s21, 0
      %p145 = por %p143, %p144
      %p146 = scmp.ne.s32.totalorder %s132, %s133
      %p147 = scmp.eq.s32.totalorder %s22, 1
      %p148 = por %p146, %p147
      %p150 = scmp.ne.s32.totalorder %s133, %s149
      %p151 = scmp.eq.s32.totalorder %s22, 0
      %p152 = por %p150, %p151
      %p153 = scmp.le.s32.totalorder 1, %s16
      %p154 = scmp.lt.s32.totalorder %s16, 3
      %p155 = pnand %p153, %p154
      %p156 = pneg %p155
      // Predicated region
      $region9: #{tpu_custom_call.1} parent=5 // pred_check
        _
      $region10: #{tpu_custom_call.1} parent=5 // pred_check_branch
        %158 = sbr.rel (%p155) target = $region12
      $region11: #{tpu_custom_call.1} parent=5 // pred_region
        %s159 = ssub.s32 %s16, 1
        // Predicated region
        $region13: #{tpu_custom_call.1} parent=11 // pred_check
          %p160 = pneg %p91
        $region14: #{tpu_custom_call.1} parent=11 // pred_check_branch
          %162 = sbr.rel (%p160) target = $region16
        $region15: #{tpu_custom_call.1} parent=11 // pred_region
          %s163 = smul.u32 16, %s28
          %s165 = ssub.s32 1024, 1024
          %166 = vsyncadd [#allocation6], %s165
          %s167 = sadd.s32 %s27, %s163
          %s168 = smul.addr %s167, 64
          %s169 = scalar_lea.hbm %s1, %s168
          %s170 = sshll.u32 [#allocation5], 4
          %s171 = int_to_ptr.vmem [resolvable:$true] %s170
          %176 = dma.hbm_to_vmem [thread:$0]  %s169, 1024, %s171, [#allocation6], 64, 64, 4
        $region16: #{tpu_custom_call.1} parent=11 // pred_fallthru
          _
        // Predicated region
        $region17: #{tpu_custom_call.1} parent=11 // pred_check
          %p177 = pneg %p117
        $region18: #{tpu_custom_call.1} parent=11 // pred_check_branch
          %179 = sbr.rel (%p177) target = $region20
        $region19: #{tpu_custom_call.1} parent=11 // pred_region
          %p180 = scmp.lt.s32.totalorder %s27, 0
          %s181 = scalar_select %p180, %s27, 0
          %s182 = scalar_lea.vmem %s2, %s181
        $region20: #{tpu_custom_call.1} parent=11 // pred_fallthru
          _
      $region12: #{tpu_custom_call.1} parent=5 // pred_fallthru
        _
      %p183 = scmp.lt.s32.totalorder %s16, 2
      // Predicated region
      $region21: #{tpu_custom_call.1} parent=5 // pred_check
        %p184 = pneg %p183
      $region22: #{tpu_custom_call.1} parent=5 // pred_check_branch
        %186 = sbr.rel (%p184) target = $region24
      $region23: #{tpu_custom_call.1} parent=5 // pred_region
        // Predicated region
        $region25: #{tpu_custom_call.1} parent=23 // pred_check
          %p187 = pneg %p57
        $region26: #{tpu_custom_call.1} parent=23 // pred_check_branch
          %189 = sbr.rel (%p187) target = $region28
        $region27: #{tpu_custom_call.1} parent=23 // pred_region
          %s190 = sand.u32 %s47, 1
          %s191 = scalar_lea.sflag [#allocation3], %s190
          %s192 = sand.u32 %s47, 1
          %s193 = smul.addr %s192, 16
          %s194 = scalar_lea.vmem [#allocation2], %s193
          %s195 = smul.u32 4, %s23
          %s197 = ssub.s32 256, 256
          %198 = vsyncadd %s191, %s197
          %s199 = sadd.s32 %s25, %s195
          %s200 = smul.addr %s199, 64
          %s201 = scalar_lea.hbm %s0, %s200
          %s202 = sshll.u32 %s194, 4
          %s203 = int_to_ptr.vmem [resolvable:$true] %s202
          %208 = dma.hbm_to_vmem [thread:$0]  %s201, 256, %s203, %s191, 64, 64, 4
        $region28: #{tpu_custom_call.1} parent=23 // pred_fallthru
          _
      $region24: #{tpu_custom_call.1} parent=5 // pred_fallthru
        _
      %p209 = scmp.le.s32.totalorder 1, %s16
      %p210 = scmp.lt.s32.totalorder %s16, 3
      %p211 = pnand %p209, %p210
      %p212 = pneg %p211
      // Predicated region
      $region29: #{tpu_custom_call.1} parent=5 // pred_check
        _
      $region30: #{tpu_custom_call.1} parent=5 // pred_check_branch
        %214 = sbr.rel (%p211) target = $region32
      $region31: #{tpu_custom_call.1} parent=5 // pred_region
        %s215 = ssub.s32 %s16, 1
        %s216 = sand.u32 %s50, 1
        %s217 = scalar_lea.sflag [#allocation3], %s216
        %s218 = sand.u32 %s50, 1
        %s219 = smul.addr %s218, 16
        %s220 = scalar_lea.vmem [#allocation2], %s219
        // Predicated region
        $region33: #{tpu_custom_call.1} parent=31 // pred_check
          %p221 = pneg %p63
        $region34: #{tpu_custom_call.1} parent=31 // pred_check_branch
          %223 = sbr.rel (%p221) target = $region36
        $region35: #{tpu_custom_call.1} parent=31 // pred_region
          %224 = dma.done %s217, 256
        $region36: #{tpu_custom_call.1} parent=31 // pred_fallthru
          _
        // Predicated region
        $region37: #{tpu_custom_call.1} parent=31 // pred_check
          %p225 = pneg %p91
        $region38: #{tpu_custom_call.1} parent=31 // pred_check_branch
          %227 = sbr.rel (%p225) target = $region40
        $region39: #{tpu_custom_call.1} parent=31 // pred_region
          %228 = dma.done [#allocation6], 1024
        $region40: #{tpu_custom_call.1} parent=31 // pred_fallthru
          _
        %s229 = sand.u32 %s50, 1
        %s230 = scalar_lea.sflag [#allocation3], %s229
        %s231 = sand.u32 %s50, 1
        %s232 = smul.addr %s231, 16
        %s233 = scalar_lea.vmem [#allocation2], %s232
        %p234 = pneg %p63
        %p235 = pneg %p60
        %p236 = pneg %p91
        %p237 = pneg %p88
        %p238 = scmp.lt.s32.totalorder %s27, 0
        %s239 = scalar_select %p238, %s27, 0
        %s240 = scalar_lea.vmem %s2, %s239
        %p241 = pneg %p117
        %p242 = pneg %p114
        %p243 = pneg %p145
        %p244 = pneg %p142
        %s245 = sand.u32 %s132, 1
        %s246 = scalar_lea.sflag [#allocation4], %s245
        %s247 = sand.u32 %s132, 1
        %s248 = smul.addr %s247, 32
        %s249 = scalar_lea.vmem [#allocation7], %s248
        %s250 = smul.u32 4, %s26
        %s251 = smul.u32 16, %s28
        %p252 = scmp.lt.s32.totalorder %s27, 0
        %s253 = scalar_select %p252, %s27, 0
        %s254 = scalar_lea.vmem %s2, %s253
        %s255 = smul.u32 4, %s26
        %p257 = scmp.eq.s32.totalorder %s28, 0
        // Predicated region
        $region41: #{tpu_custom_call.1} parent=31 // pred_check
          %p258 = pneg %p257
        $region42: #{tpu_custom_call.1} parent=31 // pred_check_branch
          %260 = sbr.rel (%p258) target = $region44
        $region43: #{tpu_custom_call.1} parent=31 // pred_region
          %261 = vst [vmem:[%s249] sm:$0xff] 0.0
          %262 = vst [vmem:[%s249 + $0x8] sm:$0xff] 0.0
          %263 = vst [vmem:[%s249 + $0x10] sm:$0xff] 0.0
          %264 = vst [vmem:[%s249 + $0x18] sm:$0xff] 0.0
        $region44: #{tpu_custom_call.1} parent=31 // pred_fallthru
          _
        %v265 = vld [vmem:[%s249] sm:$0xff]
        %v266 = vld [vmem:[%s249 + $0x8] sm:$0xff]
        %v267 = vld [vmem:[%s249 + $0x10] sm:$0xff]
        %v268 = vld [vmem:[%s249 + $0x18] sm:$0xff]
        %v269 = vld [vmem:[%s220] sm:$0xf]
        %v270 = vld [vmem:[%s220 + $0x4] sm:$0xf]
        %v271 = vld [vmem:[%s220 + $0x8] sm:$0xf]
        %v272 = vld [vmem:[%s220 + $0xc] sm:$0xf]
        %v273 = vld [vmem:[#allocation5] sm:$0xf]
        %v274 = vld [vmem:[#allocation5 + $0x4] sm:$0xf]
        %v275 = vld [vmem:[#allocation5 + $0x8] sm:$0xf]
        %v276 = vld [vmem:[#allocation5 + $0xc] sm:$0xf]
        %v277 = vld [vmem:[#allocation5 + $0x10] sm:$0xf]
        %v278 = vld [vmem:[#allocation5 + $0x14] sm:$0xf]
        %v279 = vld [vmem:[#allocation5 + $0x18] sm:$0xf]
        %v280 = vld [vmem:[#allocation5 + $0x1c] sm:$0xf]
        %v281 = vld [vmem:[#allocation5 + $0x20] sm:$0xf]
        %v282 = vld [vmem:[#allocation5 + $0x24] sm:$0xf]
        %v283 = vld [vmem:[#allocation5 + $0x28] sm:$0xf]
        %v284 = vld [vmem:[#allocation5 + $0x2c] sm:$0xf]
        %v285 = vld [vmem:[#allocation5 + $0x30] sm:$0xf]
        %v286 = vld [vmem:[#allocation5 + $0x34] sm:$0xf]
        %v287 = vld [vmem:[#allocation5 + $0x38] sm:$0xf]
        %v288 = vld [vmem:[#allocation5 + $0x3c] sm:$0xf]
        %v293 = vunpack.c.l.b16 %v269
        %v294 = vunpack.c.l.b16 %v270
        %v295 = vunpack.c.l.b16 %v271
        %v296 = vunpack.c.l.b16 %v272
        %v297 = vpack.c.b16 %v294, %v293
        %v298 = vpack.c.b16 %v296, %v295
        %v317 = vunpack.c.l.b16 %v273
        %v318 = vunpack.c.l.b16 %v274
        %v319 = vunpack.c.l.b16 %v275
        %v320 = vunpack.c.l.b16 %v276
        %v321 = vunpack.c.l.b16 %v277
        %v322 = vunpack.c.l.b16 %v278
        %v323 = vunpack.c.l.b16 %v279
        %v324 = vunpack.c.l.b16 %v280
        %v325 = vunpack.c.l.b16 %v281
        %v326 = vunpack.c.l.b16 %v282
        %v327 = vunpack.c.l.b16 %v283
        %v328 = vunpack.c.l.b16 %v284
        %v329 = vunpack.c.l.b16 %v285
        %v330 = vunpack.c.l.b16 %v286
        %v331 = vunpack.c.l.b16 %v287
        %v332 = vunpack.c.l.b16 %v288
        %v333 = vpack.c.b16 %v318, %v317
        %v334 = vpack.c.b16 %v320, %v319
        %v335 = vpack.c.b16 %v322, %v321
        %v336 = vpack.c.b16 %v324, %v323
        %v337 = vpack.c.b16 %v326, %v325
        %v338 = vpack.c.b16 %v328, %v327
        %v339 = vpack.c.b16 %v330, %v329
        %v340 = vpack.c.b16 %v332, %v331
        %349 = vmatprep.subr.bf16.mxu0 0
        %350 = vmatpush1.bf16.msra.mxu0 %v333
        %351 = vmatprep.subr.bf16.mxu0 0
        %352 = vmatpush1.bf16.msra.mxu0 %v334
        %353 = vmatprep.subr.bf16.mxu0 0
        %354 = vmatpush1.bf16.msra.mxu0 %v335
        %355 = vmatprep.subr.bf16.mxu0 0
        %356 = vmatpush1.bf16.msra.mxu0 %v336
        %357 = vmatprep.subr.bf16.mxu0 0
        %358 = vmatpush1.bf16.msra.mxu0 %v337
        %359 = vmatprep.subr.bf16.mxu0 0
        %360 = vmatpush1.bf16.msra.mxu0 %v338
        %361 = vmatprep.subr.bf16.mxu0 0
        %362 = vmatpush1.bf16.msra.mxu0 %v339
        %363 = vmatprep.subr.bf16.mxu0 0
        %364 = vmatpush1.bf16.msra.mxu0 %v340
        %365 = vmatprep.subr.bf16.mxu0 0
        %366 = vmatpush1.bf16.msra.mxu0 0
        %367 = vmatprep.subr.bf16.mxu0 0
        %368 = vmatpush1.bf16.msra.mxu0 0
        %369 = vmatprep.subr.bf16.mxu0 0
        %370 = vmatpush1.bf16.msra.mxu0 0
        %371 = vmatprep.subr.bf16.mxu0 0
        %372 = vmatpush1.bf16.msra.mxu0 0
        %373 = vmatprep.subr.bf16.mxu0 0
        %374 = vmatpush1.bf16.msra.mxu0 0
        %375 = vmatprep.subr.bf16.mxu0 0
        %376 = vmatpush1.bf16.msra.mxu0 0
        %377 = vmatprep.subr.bf16.mxu0 0
        %378 = vmatpush1.bf16.msra.mxu0 0
        %379 = vmatprep.subr.bf16.mxu0 0
        %380 = vmatpush1.bf16.msra.mxu0 0
        %381 = vmatprep.mubr.bf16.mxu0 0
        %382 = vmatmul.mubr.bf16.gmra.mrb[0].mxu0 %v297
        %v383 = vpop.f32.mrb[0].mxu0
        %v384 = vadd.f32 0.0, %v383
        %v385 = vpop.f32.mrb[0].mxu0
        %v386 = vpop.f32.mrb[0].mxu0
        %v387 = vadd.f32 0.0, %v386
        %v388 = vpop.f32.mrb[0].mxu0
        %389 = vmatprep.mubr.bf16.mxu0 0
        %390 = vmatmul.mubr.bf16.gmra.mrb[0].mxu0 %v298
        %v391 = vpop.f32.mrb[0].mxu0
        %v392 = vadd.f32 0.0, %v391
        %v393 = vpop.f32.mrb[0].mxu0
        %v394 = vpop.f32.mrb[0].mxu0
        %v395 = vadd.f32 0.0, %v394
        %v396 = vpop.f32.mrb[0].mxu0
        %397 = vdwg.mxu0
        %v398 = vadd.f32 %v265, %v384
        %v399 = vadd.f32 %v266, %v387
        %v400 = vadd.f32 %v267, %v392
        %v401 = vadd.f32 %v268, %v395
        %402 = vst [vmem:[%s249] sm:$0xff] %v398
        %403 = vst [vmem:[%s249 + $0x8] sm:$0xff] %v399
        %404 = vst [vmem:[%s249 + $0x10] sm:$0xff] %v400
        %405 = vst [vmem:[%s249 + $0x18] sm:$0xff] %v401
        // Predicated region
        $region45: #{tpu_custom_call.1} parent=31 // pred_check
          %p406 = pneg %p257
        $region46: #{tpu_custom_call.1} parent=31 // pred_check_branch
          %408 = sbr.rel (%p406) target = $region48
        $region47: #{tpu_custom_call.1} parent=31 // pred_region
          %v409 = vld [vmem:[%s249] sm:$0xff]
          %v410 = vld [vmem:[%s249 + $0x8] sm:$0xff]
          %v411 = vld [vmem:[%s249 + $0x10] sm:$0xff]
          %v412 = vld [vmem:[%s249 + $0x18] sm:$0xff]
          %v413 = vld [vmem:[%s254] sm:$0x1]
          %v415 = vlaneseq
          %v416 = vshrl.u32 %v415, 7
          %v417 = vsub.s32 0, %v416
          %v418 = vrot.slane %v413, %v417
          %v420 = vadd.f32 %v409, %v418
          %v421 = vadd.f32 %v410, %v418
          %v422 = vadd.f32 %v411, %v418
          %v423 = vadd.f32 %v412, %v418
          %v424 = vmax.f32 %v420, 0.0
          %v425 = vmax.f32 %v421, 0.0
          %v426 = vmax.f32 %v422, 0.0
          %v427 = vmax.f32 %v423, 0.0
          %428 = vst [vmem:[%s249] sm:$0xff] %v424
          %429 = vst [vmem:[%s249 + $0x8] sm:$0xff] %v425
          %430 = vst [vmem:[%s249 + $0x10] sm:$0xff] %v426
          %431 = vst [vmem:[%s249 + $0x18] sm:$0xff] %v427
        $region48: #{tpu_custom_call.1} parent=31 // pred_fallthru
          _
        %s432 = sand.u32 %s132, 1
        %s433 = scalar_lea.sflag [#allocation4], %s432
        %s434 = sand.u32 %s132, 1
        %s435 = smul.addr %s434, 32
        %s436 = scalar_lea.vmem [#allocation7], %s435
        // Predicated region
        $region49: #{tpu_custom_call.1} parent=31 // pred_check
          %p437 = pneg %p142
        $region50: #{tpu_custom_call.1} parent=31 // pred_check_branch
          %439 = sbr.rel (%p437) target = $region52
        $region51: #{tpu_custom_call.1} parent=31 // pred_region
          %s440 = smul.u32 4, %s26
          %s442 = ssub.s32 512, 512
          %443 = vsyncadd %s433, %s442
          %s444 = sadd.s32 %s27, %s440
          %s445 = smul.addr %s444, 128
          %s446 = scalar_lea.hbm %s3, %s445
          %s447 = sshll.u32 %s436, 4
          %s448 = int_to_ptr.vmem [resolvable:$true] %s447
          %453 = dma.vmem_to_hbm [thread:$0]  %s448, 512, %s446, %s433, 128, 128, 8
        $region52: #{tpu_custom_call.1} parent=31 // pred_fallthru
          _
      $region32: #{tpu_custom_call.1} parent=5 // pred_fallthru
        _
      %p454 = scmp.le.s32.totalorder 2, %s16
      // Predicated region
      $region53: #{tpu_custom_call.1} parent=5 // pred_check
        %p455 = pneg %p454
      $region54: #{tpu_custom_call.1} parent=5 // pred_check_branch
        %457 = sbr.rel (%p455) target = $region56
      $region55: #{tpu_custom_call.1} parent=5 // pred_region
        %s458 = ssub.s32 %s16, 2
        // Predicated region
        $region57: #{tpu_custom_call.1} parent=55 // pred_check
          %p459 = pneg %p148
        $region58: #{tpu_custom_call.1} parent=55 // pred_check_branch
          %461 = sbr.rel (%p459) target = $region60
        $region59: #{tpu_custom_call.1} parent=55 // pred_region
          %s462 = sand.u32 %s133, 1
          %s463 = scalar_lea.sflag [#allocation4], %s462
          %s464 = sand.u32 %s133, 1
          %s465 = smul.addr %s464, 32
          %s466 = scalar_lea.vmem [#allocation7], %s465
          %467 = dma.done %s463, 512
        $region60: #{tpu_custom_call.1} parent=55 // pred_fallthru
          _
      $region56: #{tpu_custom_call.1} parent=5 // pred_fallthru
        _
    $region6: #{tpu_custom_call.1} parent=1 // loop_footer
      %s20 = sadd.s32 1, %s16
    $region7: #{tpu_custom_call.1} parent=1 // loop_footer_branch
      %15 = sbr.rel target = $region3
    $region8: #{tpu_custom_call.1} parent=1 // loop_exit
      _
    %468 = vsyncpa [#allocation3], 1
    %s469 = scalar_lea.sflag [#allocation3], 1
    %470 = vsyncpa %s469, 1
    %471 = vsyncpa [#allocation6], 1
    %472 = vsyncpa [#allocation4], 1
    %s473 = scalar_lea.sflag [#allocation4], 1
    %474 = vsyncpa %s473, 1

</llo_original>
